<compile_context>
chip_gen: v7x
topology: tpu7x:2x2x1
jax: 0.10.0
libtpu: 0.0.40
codegen_flags: <defaults>
</compile_context>

<pallas_src>
import math

import jax
import jax.numpy as jnp
from jax.experimental import pallas as pl
from jax.experimental.pallas import tpu as pltpu


_LANE = 128
# Per-block VMEM budget.  Steady-state footprint with double-buffered input + output is
# ~4x this (16 MiB), comfortably inside the 32 MiB default scoped VMEM limit on every
# generation (v7x has 64 MiB physical VMEM, v5e/v6e 128 MiB).
_BLOCK_BYTES_TARGET = 4 * 1024 * 1024
_VMEM_LIMIT_BYTES = 32 * 1024 * 1024  # explicit == default; blocks are sized against it.


def _sublane_multiple(dtype) -> int:
    """Second-to-last block dim multiple required for packed dtypes."""
    itemsize = jnp.dtype(dtype).itemsize
    if itemsize >= 4:
        return 8
    if itemsize == 2:
        return 16
    return 32


def _lane_dense_2d_shape(shape) -> tuple:
    """Pick a lane-dense 2D (rows, cols) view of the flattened tensor."""
    n = math.prod(shape)
    for cols in (4096, 2048, 1024, 512, 256, 128):
        if n % cols == 0:
            return n // cols, cols
    # Fallback for odd sizes: keep the trailing dim (full-dim block exception applies).
    return n // shape[-1], shape[-1]


def _copy_kernel(x_ref, o_ref):
    # Pure pass-through of one lane-dense tile through VMEM.
    o_ref[...] = x_ref[...]


def _pallas_identity_2d(x2d: jax.Array) -> jax.Array:
    rows, cols = x2d.shape
    dtype = x2d.dtype
    itemsize = jnp.dtype(dtype).itemsize
    sub = _sublane_multiple(dtype)

    # Largest row-block (multiple of the sublane packing) within the per-block budget.
    max_rows = max(sub, (_BLOCK_BYTES_TARGET // (cols * itemsize)) // sub * sub)
    block_rows = min(rows, max_rows)  # either == rows (full dim) or a multiple of `sub`
    grid = (pl.cdiv(rows, block_rows),)

    spec = pl.BlockSpec((block_rows, cols), lambda i: (i, 0))
    return pl.pallas_call(
        _copy_kernel,
        out_shape=jax.ShapeDtypeStruct((rows, cols), dtype),
        grid=grid,
        in_specs=[spec],
        out_specs=spec,
        input_output_aliases={0: 0},
        compiler_params=pltpu.CompilerParams(
            dimension_semantics=("parallel",),
            vmem_limit_bytes=_VMEM_LIMIT_BYTES,
        ),
    )(x2d)


def pallas_identity(attn_weights: jax.Array) -> jax.Array:
    """Identity pass-through of attention weights via a lane-dense Pallas copy."""
    orig_shape = attn_weights.shape
    rows, cols = _lane_dense_2d_shape(orig_shape)
    y2d = _pallas_identity_2d(attn_weights.reshape(rows, cols))
    return y2d.reshape(orig_shape)


class AttentionAdapterBase:
    """JAX/Pallas port of the PyTorch AttentionAdapterBase."""

    def __init__(self, *args, **kwargs):
        self.use_flag = True
        self.input_ids = None

    def __call__(self, attn_weights: jax.Array) -> jax.Array:
        if self.use_flag:
            return self._forward(attn_weights)
        # Identity path.  (Zero-cost alternative: return attn_weights directly; the
        # Pallas pass-through is kept as the data-path template subclasses re-weight.)
        return pallas_identity(attn_weights)

    def _forward(self, attn_weights: jax.Array) -> jax.Array:
        # TODO(synk): abstract in the PyTorch base class (raises NotImplementedError);
        # concrete subclasses (e.g. AttentionAdapter) define the real reweighting.
        raise NotImplementedError

    def register_input_ids(self, input_ids: jax.Array):
        self.input_ids = input_ids


if __name__ == "__main__":
    key = jax.random.PRNGKey(0)
    # Small attention-probability tensor: (batch=2, heads=4, q_len=8, k_len=8).
    logits = jax.random.normal(key, (2, 4, 8, 8), dtype=jnp.float32)
    attn_weights = jax.nn.softmax(logits, axis=-1)
    expected = jax.nn.softmax(logits, axis=-1)  # independent reference copy

    adapter = AttentionAdapterBase()
    adapter.register_input_ids(jnp.arange(8, dtype=jnp.int32)[None, :])

    # Exercise the defined (use_flag == False) identity path.
    adapter.use_flag = False
    out = adapter(attn_weights)
    out = jax.block_until_ready(out)
    assert out.shape == expected.shape and out.dtype == expected.dtype
    assert bool(jnp.allclose(out, expected))

    # Medium-sized check that exercises the multi-block (grid > 1) tiled path:
    # 4*8*256*256 f32 = 8 MiB -> lane-dense (512, 4096) slab, 256-row blocks, grid=(2,).
    def _mk_medium():
        return (jnp.arange(4 * 8 * 256 * 256, dtype=jnp.float32) % 1003.0).reshape(
            4, 8, 256, 256
        )

    out2 = jax.block_until_ready(adapter(_mk_medium()))
    assert bool(jnp.array_equal(out2, _mk_medium()))

    # Sanity-check the use_flag == True path raises, matching the base class.
    adapter.use_flag = True
    try:
        adapter(attn_weights)
        raise AssertionError("expected NotImplementedError")
    except NotImplementedError:
        pass

    print("KERNEL_OK")
</pallas_src>

<mosaic_0001>
module attributes {stable_mosaic.version = 11 : i64} {
  func.func @_copy_kernel(%arg0: i32, %arg1: memref<1x512xf32, #tpu.memory_space<vmem>>, %arg2: memref<1x512xf32, #tpu.memory_space<vmem>>) attributes {dimension_semantics = [#tpu.dimension_semantics<parallel>], iteration_bounds = array<i64: 1>, scalar_prefetch = 0 : i64, scratch_operands = 0 : i64, tpu.core_type = #tpu.core_type<tc>, window_params = [{transform_indices = @transform_0, window_bounds = array<i64: 1, 512>}, {transform_indices = @transform_1, window_bounds = array<i64: 1, 512>}]} {
    %c0 = arith.constant 0 : index
    %c0_0 = arith.constant 0 : index
    %0 = vector.load %arg1[%c0, %c0_0] : memref<1x512xf32, #tpu.memory_space<vmem>>, vector<1x512xf32>
    %c0_1 = arith.constant 0 : index
    %c0_2 = arith.constant 0 : index
    %1 = vector.load %arg2[%c0_1, %c0_2] : memref<1x512xf32, #tpu.memory_space<vmem>>, vector<1x512xf32>
    tpu.vector_store %arg2[%c0_1, %c0_2], %0 {strides = array<i32>} : memref<1x512xf32, #tpu.memory_space<vmem>>, vector<1x512xf32>,
    return
  }
  func.func @transform_0(%arg0: i32) -> (i32, i32) {
    %c0_i32 = arith.constant 0 : i32
    %c0_i32_0 = arith.constant 0 : i32
    return %arg0, %c0_i32 : i32, i32
  }
  func.func @transform_1(%arg0: i32) -> (i32, i32) {
    %c0_i32 = arith.constant 0 : i32
    %c0_i32_0 = arith.constant 0 : i32
    return %arg0, %c0_i32 : i32, i32
  }
}

</mosaic_0001>

<llo_original>
// kernel: tpu_custom_call.1
$region0: #{tpu_custom_call.1}
  #allocation0 [shape = 'u32[]', space=smem, size = 0x4, offset = 0x4, fixed_abs, tag = 'smem constant byte address 0x4 - core index']
  #allocation1 [shape = 'u32[144,128]{1,0:T(1,128)}', space=vmem, size = 0x12000, scoped, tag = 'internal scratch']
  %s0 = inlined_call_operand.hbm [shape: f32[1,512], index: 0, kind: input, shape index: {}, may-alias: {0,1}]
  %s1 = inlined_call_operand.hbm [shape: f32[1,512], index: 1, kind: output, shape index: {}, may-alias: {0,1}]
  %s2 = sld [smem:[#allocation0]]
  $region18: #{tpu_custom_call.1} parent=0
    _
  %s4 = ssub.s32 1, %s2
  %s5 = scalar_select 0, %s4, %s2
  $region1: #{tpu_custom_call.1} parent=0
    #allocation2 [shape = 'u8[2048]{0}', space=vmem, size = 0x800, scoped, tag = 'input window, operand 0, single buffered']
    #allocation3 [shape = 's32[1]{0}', space=sflag, size = 0x4, scoped, tag = 'scoped memory for tpu_custom_call.1']
    #allocation4 [shape = 's32[1]{0}', space=sflag, size = 0x4, scoped, tag = 'scoped memory for tpu_custom_call.1']
    #allocation5 [shape = 'u8[2048]{0}', space=vmem, size = 0x800, scoped, tag = 'output window, operand 0, single buffered']
    %6 = vsyncpa [#allocation3], 0
    %7 = vsyncpa [#allocation4], 0
    // Predicated region
    $region2: #{tpu_custom_call.1} parent=1 // pred_check
      _
    $region3: #{tpu_custom_call.1} parent=1 // pred_check_branch
      %9 = sbr.rel (0) target = $region5
    $region4: #{tpu_custom_call.1} parent=1 // pred_region
      %s11 = ssub.s32 64, 64
      %12 = vsyncadd [#allocation3], %s11
      %s14 = sshll.u32 [#allocation2], 4
      %s15 = int_to_ptr.vmem [resolvable:$true] %s14
      %17 = dma.hbm_to_vmem [thread:$0]  %s0, 64, %s15, [#allocation3]
    $region5: #{tpu_custom_call.1} parent=1 // pred_fallthru
      _
    // Predicated region
    $region6: #{tpu_custom_call.1} parent=1 // pred_check
      _
    $region7: #{tpu_custom_call.1} parent=1 // pred_check_branch
      %19 = sbr.rel (0) target = $region9
    $region8: #{tpu_custom_call.1} parent=1 // pred_region
      %20 = dma.done [#allocation3], 64
    $region9: #{tpu_custom_call.1} parent=1 // pred_fallthru
      _
    %v21 = vld [vmem:[#allocation2] sm:$0xf]
    %v22 = vlaneseq
    %vm23 = vcmp.ge.s32.totalorder %v22, 0
    %vm24 = vcmp.lt.s32.totalorder %v22, 512
    %vm25 = vmand %vm23, %vm24
    %26 = vst.msk [vmem:[#allocation5] sm:$0xf] %vm25, %v21
    // Predicated region
    $region10: #{tpu_custom_call.1} parent=1 // pred_check
      _
    $region11: #{tpu_custom_call.1} parent=1 // pred_check_branch
      %28 = sbr.rel (0) target = $region13
    $region12: #{tpu_custom_call.1} parent=1 // pred_region
      %s30 = ssub.s32 64, 64
      %31 = vsyncadd [#allocation4], %s30
      %s33 = sshll.u32 [#allocation5], 4
      %s34 = int_to_ptr.vmem [resolvable:$true] %s33
      %36 = dma.vmem_to_hbm [thread:$0]  %s34, 64, %s1, [#allocation4]
    $region13: #{tpu_custom_call.1} parent=1 // pred_fallthru
      _
    // Predicated region
    $region14: #{tpu_custom_call.1} parent=1 // pred_check
      _
    $region15: #{tpu_custom_call.1} parent=1 // pred_check_branch
      %38 = sbr.rel (0) target = $region17
    $region16: #{tpu_custom_call.1} parent=1 // pred_region
      %39 = dma.done [#allocation4], 64
    $region17: #{tpu_custom_call.1} parent=1 // pred_fallthru
      _
    %40 = vsyncpa [#allocation3], 1
    %41 = vsyncpa [#allocation4], 1

</llo_original>
